<compile_context>
chip_gen: v5e
topology: v5e:2x2
jax: 0.10.0
libtpu: 0.0.40
codegen_flags: <defaults>
</compile_context>

<pallas_src>
import functools

import jax
import jax.numpy as jnp
import numpy as np
from jax.experimental import pallas as pl
from jax.experimental.pallas import tpu as pltpu


# -----------------------------------------------------------------------------
# Kernel: one block of Bb graphs per grid step.
# -----------------------------------------------------------------------------
def _gat_kernel(*refs, n_type, out_dim, q_attn, neg_slope):
    """q_attn=True refs : x(Bb,E,Din) adj(Bb,E,E) nmask(Bb,E,1) q(Bb,1,Din)
                          W(T,Din,Dout) a(T,2,Dout) qW1cat(Din,T*2Dout)
                          qW2blk(T*2Dout,T*2Dout) out(Bb,E,Dout)
       q_attn=False refs: x adj nmask W a out"""
    if q_attn:
        (x_ref, adj_ref, nmask_ref, q_ref,
         w_ref, a_ref, qw1_ref, qw2_ref, o_ref) = refs
    else:
        (x_ref, adj_ref, nmask_ref, w_ref, a_ref, o_ref) = refs
        q_ref = qw1_ref = qw2_ref = None

    f32 = jnp.float32
    x = x_ref[...]                      # (Bb, E, Din) f32
    adj = adj_ref[...]                  # (Bb, E, E)   int32 edge-type labels
    nmask = nmask_ref[...]              # (Bb, E, 1)   f32
    Bb, E, Din = x.shape
    T = n_type
    Dout = out_dim
    dn_last = (((1,), (1,)), ((), ()))  # contract last dims of both operands

    # ---- Effective score weights: v_src/v_dst[b, t, :] = W_t @ (a_* * gate) ----
    if q_attn:
        q = q_ref[...].reshape(Bb, Din)                                   # (Bb, Din)
        # Gate for ALL types in two MXU matmuls (qW1 concatenated, qW2 block-diag).
        g = jnp.maximum(jnp.dot(q, qw1_ref[...],
                                preferred_element_type=f32), 0.0)         # (Bb, T*2Dout)
        g = jax.nn.sigmoid(jnp.dot(g, qw2_ref[...],
                                   preferred_element_type=f32))           # (Bb, T*2Dout)
        src_parts, dst_parts = [], []
        for t in range(T):                                                # unrolled (T is static)
            a_t = a_ref[t]                                                # (2, Dout)
            w_t = w_ref[t]                                                # (Din, Dout)
            gt = g[:, 2 * Dout * t: 2 * Dout * (t + 1)]                   # (Bb, 2Dout)
            ag_src = a_t[0:1, :] * gt[:, :Dout]                           # (Bb, Dout)
            ag_dst = a_t[1:2, :] * gt[:, Dout:]                           # (Bb, Dout)
            v_s = jax.lax.dot_general(ag_src, w_t, dn_last,
                                      preferred_element_type=f32)         # (Bb, Din)
            v_d = jax.lax.dot_general(ag_dst, w_t, dn_last,
                                      preferred_element_type=f32)         # (Bb, Din)
            src_parts.append(v_s[:, None, :])
            dst_parts.append(v_d[:, None, :])
        v_src = jnp.concatenate(src_parts, axis=1)                        # (Bb, T, Din)
        v_dst = jnp.concatenate(dst_parts, axis=1)                        # (Bb, T, Din)
    else:
        src_rows, dst_rows = [], []
        for t in range(T):
            rows = jax.lax.dot_general(a_ref[t], w_ref[t], dn_last,
                                       preferred_element_type=f32)        # (2, Din)
            src_rows.append(rows[0:1, :])
            dst_rows.append(rows[1:2, :])
        w_src = jnp.concatenate(src_rows, axis=0)                         # (T, Din)
        w_dst = jnp.concatenate(dst_rows, axis=0)                         # (T, Din)
        v_src = jnp.broadcast_to(w_src[None], (Bb, T, Din))
        v_dst = jnp.broadcast_to(w_dst[None], (Bb, T, Din))

    # ---- Per-type src/dst scores (outer-sum factorization of the GAT score) ----
    # s_src[b,j,t] = h_t[b,j] . (a_src_t * g_src)   via x . v_src
    # s_dst[b,t,k] = h_t[b,k] . (a_dst_t * g_dst)   produced directly lane-major in k
    s_src = jnp.einsum('bjd,btd->bjt', x, v_src, preferred_element_type=f32)  # (Bb,E,T)
    s_dst = jnp.einsum('btd,bkd->btk', v_dst, x, preferred_element_type=f32)  # (Bb,T,E)

    scores = jnp.zeros((Bb, E, E), f32)
    for t in range(T):
        raw = s_src[:, :, t:t + 1] + s_dst[:, t:t + 1, :]                 # (Bb,E,E)
        sc = jnp.where(raw > 0, raw, neg_slope * raw)                     # LeakyReLU(0.2)
        scores = scores + jnp.where(adj == (t + 1), sc, 0.0)
    scores = jnp.where(adj > 0, scores, -1e30)

    # Softmax over the neighbour (lane) axis.
    m = jnp.max(scores, axis=2, keepdims=True)
    p = jnp.exp(scores - m)
    coefs = p / jnp.sum(p, axis=2, keepdims=True)                          # (Bb,E,E)

    # Reference quirk: only the LAST edge type's projection feeds aggregation,
    # node_mask is applied after the type loop.  One (Bb*E,Din)@(Din,Dout) matmul.
    x2 = x.reshape(Bb * E, Din)
    h = jnp.dot(x2, w_ref[T - 1],
                preferred_element_type=f32).reshape(Bb, E, Dout)
    h = h * nmask

    # out[b,k,:] = sum_j coefs[b,j,k] * h[b,j,:]
    out = jnp.einsum('bjk,bjd->bkd', coefs, h, preferred_element_type=f32)  # (Bb,E,Dout)
    o_ref[...] = out.astype(o_ref.dtype)


# -----------------------------------------------------------------------------
# Wrapper
# -----------------------------------------------------------------------------
def _const_spec(arr):
    nd = arr.ndim
    return pl.BlockSpec(arr.shape, lambda i, _nd=nd: (0,) * _nd)


def _pick_block_b(n, e, din, dout, q_attn):
    """Pick graphs-per-step: fill ~256 MXU rows, stay far under scoped VMEM."""
    per_graph_bytes = 4 * (e * din + e * e + e + e * dout + (din if q_attn else 0))
    budget = 8 << 20                                   # safe on v5e/v6e/v7x defaults
    cap = max(1, budget // max(2 * per_graph_bytes, 1))  # x2: double-buffered blocks
    target = max(1, 256 // max(e, 1))                  # Bb*E ~ 256 rows
    return max(1, min(n, target, cap))


def gat_self_attention(input_state, adj, node_mask, query_vec, params,
                       *, q_attn, neg_slope=0.2, block_b=None):
    """input_state: (N,E,Din), adj: (N,E,E), node_mask: (N,E,1) or None,
    query_vec: (N,Din) or None (unused when q_attn=False)  ->  (N,E,Dout)."""
    N, E, Din = input_state.shape
    W = params["W"]                     # (T, Din, Dout)
    A = params["a"]                     # (T, 2, Dout)
    T, _, Dout = W.shape
    f32 = jnp.float32

    x = input_state.astype(f32)
    adj = jnp.asarray(adj)
    if jnp.issubdtype(adj.dtype, jnp.floating):
        adj_i = jnp.rint(adj).astype(jnp.int32)        # robust integer labels
    else:
        adj_i = adj.astype(jnp.int32)
    if node_mask is None:
        nmask = jnp.ones((N, E, 1), f32)
    else:
        nmask = jnp.reshape(node_mask, (N, E, 1)).astype(f32)

    if block_b is None:
        block_b = _pick_block_b(N, E, Din, Dout, q_attn)
    Bb = int(block_b)
    G = -(-N // Bb)                      # cdiv
    Np = G * Bb

    def pad_b(arr):                      # pad batch to a multiple of Bb (zeros are inert)
        if Np == N:
            return arr
        return jnp.pad(arr, [(0, Np - N)] + [(0, 0)] * (arr.ndim - 1))

    inputs = [pad_b(x), pad_b(adj_i), pad_b(nmask)]
    in_specs = [
        pl.BlockSpec((Bb, E, Din), lambda i: (i, 0, 0)),
        pl.BlockSpec((Bb, E, E), lambda i: (i, 0, 0)),
        pl.BlockSpec((Bb, E, 1), lambda i: (i, 0, 0)),
    ]
    if q_attn:
        q = query_vec.astype(f32).reshape(N, 1, Din)
        inputs.append(pad_b(q))
        in_specs.append(pl.BlockSpec((Bb, 1, Din), lambda i: (i, 0, 0)))

    W32 = W.astype(f32)
    A32 = A.astype(f32)
    inputs += [W32, A32]
    in_specs += [_const_spec(W32), _const_spec(A32)]
    if q_attn:
        # Concatenate qW1 over types and assemble qW2 block-diagonally so the
        # whole query gate is two well-filled MXU matmuls inside the kernel.
        qW1_cat = jnp.concatenate([params["qW1"][t] for t in range(T)],
                                  axis=1).astype(f32)              # (Din, T*2Dout)
        qW2_blk = jax.scipy.linalg.block_diag(
            *[params["qW2"][t] for t in range(T)]).astype(f32)     # (T*2Dout, T*2Dout)
        inputs += [qW1_cat, qW2_blk]
        in_specs += [_const_spec(qW1_cat), _const_spec(qW2_blk)]

    kernel = functools.partial(_gat_kernel, n_type=T, out_dim=Dout,
                               q_attn=q_attn, neg_slope=neg_slope)

    out = pl.pallas_call(
        kernel,
        out_shape=jax.ShapeDtypeStruct((Np, E, Dout), f32),
        grid=(G,),
        in_specs=in_specs,
        out_specs=pl.BlockSpec((Bb, E, Dout), lambda i: (i, 0, 0)),
        compiler_params=pltpu.CompilerParams(
            dimension_semantics=("parallel",)),   # batch blocks split across TCs on v7x
    )(*inputs)
    return out[:N]


# -----------------------------------------------------------------------------
# Deterministic parameter init
# -----------------------------------------------------------------------------
def init_gat_params(key, in_dim, out_dim, n_type, q_attn):
    ks = jax.random.split(key, 4)
    # a_type is stored split into its two halves: a[:,0,:] = a[:d], a[:,1,:] = a[d:].
    params = {
        "W": jax.random.normal(ks[0], (n_type, in_dim, out_dim), jnp.float32) * 0.1,
        "a": jax.random.normal(ks[1], (n_type, 2, out_dim), jnp.float32) * 0.1,
    }
    if q_attn:
        params["qW1"] = jax.random.normal(
            ks[2], (n_type, in_dim, 2 * out_dim), jnp.float32) * 0.1
        params["qW2"] = jax.random.normal(
            ks[3], (n_type, 2 * out_dim, 2 * out_dim), jnp.float32) * 0.1
    return params


# -----------------------------------------------------------------------------
# Pure-JAX reference (literal transcription of the PyTorch forward)
# -----------------------------------------------------------------------------
def _ref_gat(x, adj, node_mask, query_vec, params, neg_slope=0.2):
    W, A = params["W"], params["a"]
    T, _, Dout = W.shape
    N, E, _ = x.shape
    q_attn = "qW1" in params

    scores = jnp.zeros_like(adj)
    h = None
    for i in range(T):
        h = jnp.matmul(x, W[i])                                  # (N, E, Dout)
        left = jnp.repeat(h, E, axis=1)                          # h.repeat(1,1,E).view(N,E*E,-1)
        right = jnp.tile(h, (1, E, 1))                           # h.repeat(1,E,1)
        a_in = jnp.concatenate([left, right], axis=-1).reshape(N, E, E, 2 * Dout)
        a_vec = jnp.concatenate([A[i, 0], A[i, 1]])[:, None]     # (2Dout, 1)
        if q_attn:
            g = jax.nn.relu(query_vec @ params["qW1"][i])
            g = jax.nn.sigmoid(g @ params["qW2"][i])             # (N, 2Dout)
            a_in = a_in * g[:, None, None, :]
        raw = jnp.matmul(a_in, a_vec)[..., 0]                    # (N, E, E)
        score = jnp.where(raw > 0, raw, neg_slope * raw)
        scores = scores + jnp.where(adj == i + 1, score, 0.0)

    scores = jnp.where(adj > 0, scores, -1e30)
    if node_mask is not None:
        h = h * node_mask
    coefs = jax.nn.softmax(scores, axis=2)
    return jnp.einsum("njk,njd->nkd", coefs, h)


# -----------------------------------------------------------------------------
# Main
# -----------------------------------------------------------------------------
if __name__ == "__main__":
    N, E, IN_DIM, OUT_DIM, N_TYPE = 2, 8, 32, 32, 3

    root = jax.random.PRNGKey(0)
    k = jax.random.split(root, 8)

    input_state = jax.random.normal(k[0], (N, E, IN_DIM), jnp.float32)
    query_vec = jax.random.normal(k[1], (N, IN_DIM), jnp.float32)

    adj = jax.random.randint(k[2], (N, E, E), 0, N_TYPE + 1).astype(jnp.float32)
    eye = jnp.eye(E, dtype=bool)[None]
    adj = jnp.where(eye, jnp.maximum(adj, 1.0), adj)   # self-loops: no fully masked row

    node_mask = (jax.random.uniform(k[3], (N, E, 1)) > 0.2).astype(jnp.float32)

    params_q = init_gat_params(k[4], IN_DIM, OUT_DIM, N_TYPE, q_attn=True)
    params_nq = init_gat_params(k[5], IN_DIM, OUT_DIM, N_TYPE, q_attn=False)

    # q_attn=True head: default batch block (Bb=N, grid=1).
    out_q = gat_self_attention(input_state, adj, node_mask, query_vec,
                               params_q, q_attn=True)
    # q_attn=False head: block_b=1 exercises the multi-step (grid=2) path too.
    out_nq = gat_self_attention(input_state, adj, None, None,
                                params_nq, q_attn=False, block_b=1)
    out_q, out_nq = jax.block_until_ready((out_q, out_nq))

    ref_q = _ref_gat(input_state, adj, node_mask, query_vec, params_q)
    ref_nq = _ref_gat(input_state, adj, None, None, params_nq)

    np.testing.assert_allclose(np.asarray(out_q), np.asarray(ref_q),
                               rtol=2e-3, atol=2e-3)
    np.testing.assert_allclose(np.asarray(out_nq), np.asarray(ref_nq),
                               rtol=2e-3, atol=2e-3)

    print("KERNEL_OK")
</pallas_src>

<mosaic_0001>
module attributes {stable_mosaic.version = 11 : i64} {
  func.func @_gat_kernel(%arg0: i32, %arg1: memref<2x8x32xf32, #tpu.memory_space<vmem>>, %arg2: memref<2x8x8xi32, #tpu.memory_space<vmem>>, %arg3: memref<2x8x1xf32, #tpu.memory_space<vmem>>, %arg4: memref<2x1x32xf32, #tpu.memory_space<vmem>>, %arg5: memref<3x32x32xf32, #tpu.memory_space<vmem>>, %arg6: memref<3x2x32xf32, #tpu.memory_space<vmem>>, %arg7: memref<32x192xf32, #tpu.memory_space<vmem>>, %arg8: memref<192x192xf32, #tpu.memory_space<vmem>>, %arg9: memref<2x8x32xf32, #tpu.memory_space<vmem>>) attributes {dimension_semantics = [#tpu.dimension_semantics<parallel>], iteration_bounds = array<i64: 1>, scalar_prefetch = 0 : i64, scratch_operands = 0 : i64, tpu.core_type = #tpu.core_type<tc>, window_params = [{transform_indices = @transform_0, window_bounds = array<i64: 2, 8, 32>}, {transform_indices = @transform_1, window_bounds = array<i64: 2, 8, 8>}, {transform_indices = @transform_2, window_bounds = array<i64: 2, 8, 1>}, {transform_indices = @transform_3, window_bounds = array<i64: 2, 1, 32>}, {pipeline_mode = #tpu.pipeline_mode<synchronous>, transform_indices = @transform_4, window_bounds = array<i64: 3, 32, 32>}, {pipeline_mode = #tpu.pipeline_mode<synchronous>, transform_indices = @transform_5, window_bounds = array<i64: 3, 2, 32>}, {pipeline_mode = #tpu.pipeline_mode<synchronous>, transform_indices = @transform_6, window_bounds = array<i64: 32, 192>}, {pipeline_mode = #tpu.pipeline_mode<synchronous>, transform_indices = @transform_7, window_bounds = array<i64: 192, 192>}, {transform_indices = @transform_8, window_bounds = array<i64: 2, 8, 32>}]} {
    %c0 = arith.constant 0 : index
    %c0_0 = arith.constant 0 : index
    %c0_1 = arith.constant 0 : index
    %0 = vector.load %arg1[%c0, %c0_0, %c0_1] : memref<2x8x32xf32, #tpu.memory_space<vmem>>, vector<2x8x32xf32>
    %c0_2 = arith.constant 0 : index
    %c0_3 = arith.constant 0 : index
    %c0_4 = arith.constant 0 : index
    %1 = vector.load %arg2[%c0_2, %c0_3, %c0_4] : memref<2x8x8xi32, #tpu.memory_space<vmem>>, vector<2x8x8xi32>
    %c0_5 = arith.constant 0 : index
    %c0_6 = arith.constant 0 : index
    %c0_7 = arith.constant 0 : index
    %2 = vector.load %arg3[%c0_5, %c0_6, %c0_7] : memref<2x8x1xf32, #tpu.memory_space<vmem>>, vector<2x8x1xf32>
    %c0_8 = arith.constant 0 : index
    %c0_9 = arith.constant 0 : index
    %c0_10 = arith.constant 0 : index
    %3 = vector.load %arg4[%c0_8, %c0_9, %c0_10] : memref<2x1x32xf32, #tpu.memory_space<vmem>>, vector<2x1x32xf32>
    %4 = vector.shape_cast %3 : vector<2x1x32xf32> to vector<2x32xf32>
    %c0_11 = arith.constant 0 : index
    %c0_12 = arith.constant 0 : index
    %5 = vector.load %arg7[%c0_11, %c0_12] : memref<32x192xf32, #tpu.memory_space<vmem>>, vector<32x192xf32>
    %cst = arith.constant dense<0.000000e+00> : vector<2x192xf32>
    %6 = tpu.matmul %4, %5, %cst {dimension_numbers = #tpu.dot_dimension_numbers<[1], [0], [0], [1], [0, 0, 1, 1], [], []>} : vector<2x32xf32>, vector<32x192xf32>, vector<2x192xf32> -> vector<2x192xf32>
    %cst_13 = arith.constant 0.000000e+00 : f32
    %7 = vector.broadcast %cst_13 : f32 to vector<2x192xf32>
    %8 = arith.maximumf %6, %7 : vector<2x192xf32>
    %c0_14 = arith.constant 0 : index
    %c0_15 = arith.constant 0 : index
    %9 = vector.load %arg8[%c0_14, %c0_15] : memref<192x192xf32, #tpu.memory_space<vmem>>, vector<192x192xf32>
    %cst_16 = arith.constant dense<0.000000e+00> : vector<2x192xf32>
    %10 = tpu.matmul %8, %9, %cst_16 {dimension_numbers = #tpu.dot_dimension_numbers<[1], [0], [0], [1], [0, 0, 1, 1], [], []>} : vector<2x192xf32>, vector<192x192xf32>, vector<2x192xf32> -> vector<2x192xf32>
    %11 = arith.negf %10 : vector<2x192xf32>
    %12 = math.exp %11 : vector<2x192xf32>
    %cst_17 = arith.constant 1.000000e+00 : f32
    %13 = vector.broadcast %cst_17 : f32 to vector<2x192xf32>
    %14 = arith.addf %13, %12 : vector<2x192xf32>
    %15 = arith.divf %13, %14 : vector<2x192xf32>
    %c0_18 = arith.constant 0 : index
    %c0_19 = arith.constant 0 : index
    %c0_20 = arith.constant 0 : index
    %16 = vector.load %arg6[%c0_18, %c0_19, %c0_20] : memref<3x2x32xf32, #tpu.memory_space<vmem>>, vector<1x2x32xf32>
    %17 = vector.shape_cast %16 : vector<1x2x32xf32> to vector<2x32xf32>
    %c0_21 = arith.constant 0 : index
    %c0_22 = arith.constant 0 : index
    %c0_23 = arith.constant 0 : index
    %18 = vector.load %arg5[%c0_21, %c0_22, %c0_23] : memref<3x32x32xf32, #tpu.memory_space<vmem>>, vector<1x32x32xf32>
    %19 = vector.shape_cast %18 : vector<1x32x32xf32> to vector<32x32xf32>
    %20 = vector.extract_strided_slice %15 {offsets = [0, 0], sizes = [2, 64], strides = [1, 1]} : vector<2x192xf32> to vector<2x64xf32>
    %21 = vector.extract_strided_slice %17 {offsets = [0, 0], sizes = [1, 32], strides = [1, 1]} : vector<2x32xf32> to vector<1x32xf32>
    %22 = vector.extract_strided_slice %20 {offsets = [0, 0], sizes = [2, 32], strides = [1, 1]} : vector<2x64xf32> to vector<2x32xf32>
    %23 = vector.broadcast %21 : vector<1x32xf32> to vector<2x32xf32>
    %24 = arith.mulf %23, %22 : vector<2x32xf32>
    %25 = vector.extract_strided_slice %17 {offsets = [1, 0], sizes = [1, 32], strides = [1, 1]} : vector<2x32xf32> to vector<1x32xf32>
    %26 = vector.extract_strided_slice %20 {offsets = [0, 32], sizes = [2, 32], strides = [1, 1]} : vector<2x64xf32> to vector<2x32xf32>
    %27 = vector.broadcast %25 : vector<1x32xf32> to vector<2x32xf32>
    %28 = arith.mulf %27, %26 : vector<2x32xf32>
    %cst_24 = arith.constant dense<0.000000e+00> : vector<2x32xf32>
    %29 = tpu.matmul %24, %19, %cst_24 {dimension_numbers = #tpu.dot_dimension_numbers<[1], [1], [0], [0], [0, 0, 1, 0], [], []>} : vector<2x32xf32>, vector<32x32xf32>, vector<2x32xf32> -> vector<2x32xf32>
    %cst_25 = arith.constant dense<0.000000e+00> : vector<2x32xf32>
    %30 = tpu.matmul %28, %19, %cst_25 {dimension_numbers = #tpu.dot_dimension_numbers<[1], [1], [0], [0], [0, 0, 1, 0], [], []>} : vector<2x32xf32>, vector<32x32xf32>, vector<2x32xf32> -> vector<2x32xf32>
    %31 = vector.shape_cast %29 : vector<2x32xf32> to vector<2x1x32xf32>
    %32 = vector.shape_cast %30 : vector<2x32xf32> to vector<2x1x32xf32>
    %c1 = arith.constant 1 : index
    %c0_26 = arith.constant 0 : index
    %c0_27 = arith.constant 0 : index
    %33 = vector.load %arg6[%c1, %c0_26, %c0_27] : memref<3x2x32xf32, #tpu.memory_space<vmem>>, vector<1x2x32xf32>
    %34 = vector.shape_cast %33 : vector<1x2x32xf32> to vector<2x32xf32>
    %c1_28 = arith.constant 1 : index
    %c0_29 = arith.constant 0 : index
    %c0_30 = arith.constant 0 : index
    %35 = vector.load %arg5[%c1_28, %c0_29, %c0_30] : memref<3x32x32xf32, #tpu.memory_space<vmem>>, vector<1x32x32xf32>
    %36 = vector.shape_cast %35 : vector<1x32x32xf32> to vector<32x32xf32>
    %37 = vector.extract_strided_slice %15 {offsets = [0, 64], sizes = [2, 64], strides = [1, 1]} : vector<2x192xf32> to vector<2x64xf32>
    %38 = vector.extract_strided_slice %34 {offsets = [0, 0], sizes = [1, 32], strides = [1, 1]} : vector<2x32xf32> to vector<1x32xf32>
    %39 = vector.extract_strided_slice %37 {offsets = [0, 0], sizes = [2, 32], strides = [1, 1]} : vector<2x64xf32> to vector<2x32xf32>
    %40 = vector.broadcast %38 : vector<1x32xf32> to vector<2x32xf32>
    %41 = arith.mulf %40, %39 : vector<2x32xf32>
    %42 = vector.extract_strided_slice %34 {offsets = [1, 0], sizes = [1, 32], strides = [1, 1]} : vector<2x32xf32> to vector<1x32xf32>
    %43 = vector.extract_strided_slice %37 {offsets = [0, 32], sizes = [2, 32], strides = [1, 1]} : vector<2x64xf32> to vector<2x32xf32>
    %44 = vector.broadcast %42 : vector<1x32xf32> to vector<2x32xf32>
    %45 = arith.mulf %44, %43 : vector<2x32xf32>
    %cst_31 = arith.constant dense<0.000000e+00> : vector<2x32xf32>
    %46 = tpu.matmul %41, %36, %cst_31 {dimension_numbers = #tpu.dot_dimension_numbers<[1], [1], [0], [0], [0, 0, 1, 0], [], []>} : vector<2x32xf32>, vector<32x32xf32>, vector<2x32xf32> -> vector<2x32xf32>
    %cst_32 = arith.constant dense<0.000000e+00> : vector<2x32xf32>
    %47 = tpu.matmul %45, %36, %cst_32 {dimension_numbers = #tpu.dot_dimension_numbers<[1], [1], [0], [0], [0, 0, 1, 0], [], []>} : vector<2x32xf32>, vector<32x32xf32>, vector<2x32xf32> -> vector<2x32xf32>
    %48 = vector.shape_cast %46 : vector<2x32xf32> to vector<2x1x32xf32>
    %49 = vector.shape_cast %47 : vector<2x32xf32> to vector<2x1x32xf32>
    %c2 = arith.constant 2 : index
    %c0_33 = arith.constant 0 : index
    %c0_34 = arith.constant 0 : index
    %50 = vector.load %arg6[%c2, %c0_33, %c0_34] : memref<3x2x32xf32, #tpu.memory_space<vmem>>, vector<1x2x32xf32>
    %51 = vector.shape_cast %50 : vector<1x2x32xf32> to vector<2x32xf32>
    %c2_35 = arith.constant 2 : index
    %c0_36 = arith.constant 0 : index
    %c0_37 = arith.constant 0 : index
    %52 = vector.load %arg5[%c2_35, %c0_36, %c0_37] : memref<3x32x32xf32, #tpu.memory_space<vmem>>, vector<1x32x32xf32>
    %53 = vector.shape_cast %52 : vector<1x32x32xf32> to vector<32x32xf32>
    %54 = vector.extract_strided_slice %15 {offsets = [0, 128], sizes = [2, 64], strides = [1, 1]} : vector<2x192xf32> to vector<2x64xf32>
    %55 = vector.extract_strided_slice %51 {offsets = [0, 0], sizes = [1, 32], strides = [1, 1]} : vector<2x32xf32> to vector<1x32xf32>
    %56 = vector.extract_strided_slice %54 {offsets = [0, 0], sizes = [2, 32], strides = [1, 1]} : vector<2x64xf32> to vector<2x32xf32>
    %57 = vector.broadcast %55 : vector<1x32xf32> to vector<2x32xf32>
    %58 = arith.mulf %57, %56 : vector<2x32xf32>
    %59 = vector.extract_strided_slice %51 {offsets = [1, 0], sizes = [1, 32], strides = [1, 1]} : vector<2x32xf32> to vector<1x32xf32>
    %60 = vector.extract_strided_slice %54 {offsets = [0, 32], sizes = [2, 32], strides = [1, 1]} : vector<2x64xf32> to vector<2x32xf32>
    %61 = vector.broadcast %59 : vector<1x32xf32> to vector<2x32xf32>
    %62 = arith.mulf %61, %60 : vector<2x32xf32>
    %cst_38 = arith.constant dense<0.000000e+00> : vector<2x32xf32>
    %63 = tpu.matmul %58, %53, %cst_38 {dimension_numbers = #tpu.dot_dimension_numbers<[1], [1], [0], [0], [0, 0, 1, 0], [], []>} : vector<2x32xf32>, vector<32x32xf32>, vector<2x32xf32> -> vector<2x32xf32>
    %cst_39 = arith.constant dense<0.000000e+00> : vector<2x32xf32>
    %64 = tpu.matmul %62, %53, %cst_39 {dimension_numbers = #tpu.dot_dimension_numbers<[1], [1], [0], [0], [0, 0, 1, 0], [], []>} : vector<2x32xf32>, vector<32x32xf32>, vector<2x32xf32> -> vector<2x32xf32>
    %65 = vector.shape_cast %63 : vector<2x32xf32> to vector<2x1x32xf32>
    %66 = vector.shape_cast %64 : vector<2x32xf32> to vector<2x1x32xf32>
    %67 = tpu.concatenate %31, %48, %65 in 1 : vector<2x1x32xf32>, vector<2x1x32xf32>, vector<2x1x32xf32> -> vector<2x3x32xf32>
    %68 = tpu.concatenate %32, %49, %66 in 1 : vector<2x1x32xf32>, vector<2x1x32xf32>, vector<2x1x32xf32> -> vector<2x3x32xf32>
    "tpu.trace_start"() <{level = 10 : i32, message = "bjd,btd->bjt"}> : () -> ()
    %cst_40 = arith.constant dense<0.000000e+00> : vector<2x8x3xf32>
    %69 = tpu.matmul %0, %67, %cst_40 {dimension_numbers = #tpu.dot_dimension_numbers<[2], [2], [1], [1], [0, 0, 0, 1, 1, 1], [0], [0]>} : vector<2x8x32xf32>, vector<2x3x32xf32>, vector<2x8x3xf32> -> vector<2x8x3xf32>
    "tpu.trace_stop"() : () -> ()
    "tpu.trace_start"() <{level = 10 : i32, message = "btd,bkd->btk"}> : () -> ()
    %cst_41 = arith.constant dense<0.000000e+00> : vector<2x3x8xf32>
    %70 = tpu.matmul %68, %0, %cst_41 {dimension_numbers = #tpu.dot_dimension_numbers<[2], [2], [1], [1], [0, 0, 0, 1, 1, 1], [0], [0]>} : vector<2x3x32xf32>, vector<2x8x32xf32>, vector<2x3x8xf32> -> vector<2x3x8xf32>
    %cst_42 = arith.constant 0.000000e+00 : f32
    "tpu.trace_stop"() : () -> ()
    %71 = vector.broadcast %cst_42 : f32 to vector<2x8x8xf32>
    %72 = vector.extract_strided_slice %69 {offsets = [0, 0, 0], sizes = [2, 8, 1], strides = [1, 1, 1]} : vector<2x8x3xf32> to vector<2x8x1xf32>
    %73 = vector.extract_strided_slice %70 {offsets = [0, 0, 0], sizes = [2, 1, 8], strides = [1, 1, 1]} : vector<2x3x8xf32> to vector<2x1x8xf32>
    %74 = vector.broadcast %72 : vector<2x8x1xf32> to vector<2x8x8xf32>
    %75 = vector.broadcast %73 : vector<2x1x8xf32> to vector<2x8x8xf32>
    %76 = arith.addf %74, %75 : vector<2x8x8xf32>
    %cst_43 = arith.constant 0.000000e+00 : f32
    %77 = vector.broadcast %cst_43 : f32 to vector<2x8x8xf32>
    %78 = arith.cmpf ogt, %76, %77 : vector<2x8x8xf32>
    %cst_44 = arith.constant 2.000000e-01 : f32
    %79 = vector.broadcast %cst_44 : f32 to vector<2x8x8xf32>
    %80 = arith.mulf %79, %76 : vector<2x8x8xf32>
    %81 = arith.select %78, %76, %80 : vector<2x8x8xi1>, vector<2x8x8xf32>
    %c1_i32 = arith.constant 1 : i32
    %82 = vector.broadcast %c1_i32 : i32 to vector<2x8x8xi32>
    %83 = arith.cmpi eq, %1, %82 : vector<2x8x8xi32>
    %cst_45 = arith.constant 0.000000e+00 : f32
    %84 = vector.broadcast %cst_45 : f32 to vector<2x8x8xf32>
    %85 = arith.select %83, %81, %84 : vector<2x8x8xi1>, vector<2x8x8xf32>
    %86 = arith.addf %71, %85 : vector<2x8x8xf32>
    %87 = vector.extract_strided_slice %69 {offsets = [0, 0, 1], sizes = [2, 8, 1], strides = [1, 1, 1]} : vector<2x8x3xf32> to vector<2x8x1xf32>
    %88 = vector.extract_strided_slice %70 {offsets = [0, 1, 0], sizes = [2, 1, 8], strides = [1, 1, 1]} : vector<2x3x8xf32> to vector<2x1x8xf32>
    %89 = vector.broadcast %87 : vector<2x8x1xf32> to vector<2x8x8xf32>
    %90 = vector.broadcast %88 : vector<2x1x8xf32> to vector<2x8x8xf32>
    %91 = arith.addf %89, %90 : vector<2x8x8xf32>
    %cst_46 = arith.constant 0.000000e+00 : f32
    %92 = vector.broadcast %cst_46 : f32 to vector<2x8x8xf32>
    %93 = arith.cmpf ogt, %91, %92 : vector<2x8x8xf32>
    %cst_47 = arith.constant 2.000000e-01 : f32
    %94 = vector.broadcast %cst_47 : f32 to vector<2x8x8xf32>
    %95 = arith.mulf %94, %91 : vector<2x8x8xf32>
    %96 = arith.select %93, %91, %95 : vector<2x8x8xi1>, vector<2x8x8xf32>
    %c2_i32 = arith.constant 2 : i32
    %97 = vector.broadcast %c2_i32 : i32 to vector<2x8x8xi32>
    %98 = arith.cmpi eq, %1, %97 : vector<2x8x8xi32>
    %cst_48 = arith.constant 0.000000e+00 : f32
    %99 = vector.broadcast %cst_48 : f32 to vector<2x8x8xf32>
    %100 = arith.select %98, %96, %99 : vector<2x8x8xi1>, vector<2x8x8xf32>
    %101 = arith.addf %86, %100 : vector<2x8x8xf32>
    %102 = vector.extract_strided_slice %69 {offsets = [0, 0, 2], sizes = [2, 8, 1], strides = [1, 1, 1]} : vector<2x8x3xf32> to vector<2x8x1xf32>
    %103 = vector.extract_strided_slice %70 {offsets = [0, 2, 0], sizes = [2, 1, 8], strides = [1, 1, 1]} : vector<2x3x8xf32> to vector<2x1x8xf32>
    %104 = vector.broadcast %102 : vector<2x8x1xf32> to vector<2x8x8xf32>
    %105 = vector.broadcast %103 : vector<2x1x8xf32> to vector<2x8x8xf32>
    %106 = arith.addf %104, %105 : vector<2x8x8xf32>
    %cst_49 = arith.constant 0.000000e+00 : f32
    %107 = vector.broadcast %cst_49 : f32 to vector<2x8x8xf32>
    %108 = arith.cmpf ogt, %106, %107 : vector<2x8x8xf32>
    %cst_50 = arith.constant 2.000000e-01 : f32
    %109 = vector.broadcast %cst_50 : f32 to vector<2x8x8xf32>
    %110 = arith.mulf %109, %106 : vector<2x8x8xf32>
    %111 = arith.select %108, %106, %110 : vector<2x8x8xi1>, vector<2x8x8xf32>
    %c3_i32 = arith.constant 3 : i32
    %112 = vector.broadcast %c3_i32 : i32 to vector<2x8x8xi32>
    %113 = arith.cmpi eq, %1, %112 : vector<2x8x8xi32>
    %cst_51 = arith.constant 0.000000e+00 : f32
    %114 = vector.broadcast %cst_51 : f32 to vector<2x8x8xf32>
    %115 = arith.select %113, %111, %114 : vector<2x8x8xi1>, vector<2x8x8xf32>
    %116 = arith.addf %101, %115 : vector<2x8x8xf32>
    %c0_i32 = arith.constant 0 : i32
    %117 = vector.broadcast %c0_i32 : i32 to vector<2x8x8xi32>
    %118 = arith.cmpi sgt, %1, %117 : vector<2x8x8xi32>
    %cst_52 = arith.constant -1.000000e+30 : f32
    %119 = vector.broadcast %cst_52 : f32 to vector<2x8x8xf32>
    %120 = arith.select %118, %116, %119 : vector<2x8x8xi1>, vector<2x8x8xf32>
    %cst_53 = arith.constant dense<0xFF800000> : vector<2x8xf32>
    %121 = vector.multi_reduction <maximumf>, %120, %cst_53 [2] : vector<2x8x8xf32> to vector<2x8xf32>
    %122 = vector.shape_cast %121 : vector<2x8xf32> to vector<2x8x1xf32>
    %123 = vector.broadcast %122 : vector<2x8x1xf32> to vector<2x8x8xf32>
    %124 = arith.subf %120, %123 : vector<2x8x8xf32>
    %125 = math.exp %124 : vector<2x8x8xf32>
    %cst_54 = arith.constant dense<0.000000e+00> : vector<2x8xf32>
    %126 = vector.multi_reduction <add>, %125, %cst_54 [2] : vector<2x8x8xf32> to vector<2x8xf32>
    %127 = vector.shape_cast %126 : vector<2x8xf32> to vector<2x8x1xf32>
    %128 = vector.broadcast %127 : vector<2x8x1xf32> to vector<2x8x8xf32>
    %129 = arith.divf %125, %128 : vector<2x8x8xf32>
    %130 = vector.shape_cast %0 : vector<2x8x32xf32> to vector<16x32xf32>
    %c2_55 = arith.constant 2 : index
    %c0_56 = arith.constant 0 : index
    %c0_57 = arith.constant 0 : index
    %131 = vector.load %arg5[%c2_55, %c0_56, %c0_57] : memref<3x32x32xf32, #tpu.memory_space<vmem>>, vector<1x32x32xf32>
    %132 = vector.shape_cast %131 : vector<1x32x32xf32> to vector<32x32xf32>
    %cst_58 = arith.constant dense<0.000000e+00> : vector<16x32xf32>
    %133 = tpu.matmul %130, %132, %cst_58 {dimension_numbers = #tpu.dot_dimension_numbers<[1], [0], [0], [1], [0, 0, 1, 1], [], []>} : vector<16x32xf32>, vector<32x32xf32>, vector<16x32xf32> -> vector<16x32xf32>
    %134 = vector.shape_cast %133 : vector<16x32xf32> to vector<2x8x32xf32>
    %135 = vector.broadcast %2 : vector<2x8x1xf32> to vector<2x8x32xf32>
    %136 = arith.mulf %134, %135 : vector<2x8x32xf32>
    "tpu.trace_start"() <{level = 10 : i32, message = "bjk,bjd->bkd"}> : () -> ()
    %cst_59 = arith.constant dense<0.000000e+00> : vector<2x8x32xf32>
    %137 = tpu.matmul %129, %136, %cst_59 {dimension_numbers = #tpu.dot_dimension_numbers<[1], [1], [2], [2], [0, 0, 0, 2, 1, 2], [0], [0]>} : vector<2x8x8xf32>, vector<2x8x32xf32>, vector<2x8x32xf32> -> vector<2x8x32xf32>
    "tpu.trace_stop"() : () -> ()
    %c0_60 = arith.constant 0 : index
    %c0_61 = arith.constant 0 : index
    %c0_62 = arith.constant 0 : index
    %138 = vector.load %arg9[%c0_60, %c0_61, %c0_62] : memref<2x8x32xf32, #tpu.memory_space<vmem>>, vector<2x8x32xf32>
    tpu.vector_store %arg9[%c0_60, %c0_61, %c0_62], %137 {strides = array<i32>} : memref<2x8x32xf32, #tpu.memory_space<vmem>>, vector<2x8x32xf32>,
    return
  }
  func.func @transform_0(%arg0: i32) -> (i32, i32, i32) {
    %c0_i32 = arith.constant 0 : i32
    %c0_i32_0 = arith.constant 0 : i32
    %c0_i32_1 = arith.constant 0 : i32
    return %arg0, %c0_i32, %c0_i32_0 : i32, i32, i32
  }
  func.func @transform_1(%arg0: i32) -> (i32, i32, i32) {
    %c0_i32 = arith.constant 0 : i32
    %c0_i32_0 = arith.constant 0 : i32
    %c0_i32_1 = arith.constant 0 : i32
    return %arg0, %c0_i32, %c0_i32_0 : i32, i32, i32
  }
  func.func @transform_2(%arg0: i32) -> (i32, i32, i32) {
    %c0_i32 = arith.constant 0 : i32
    %c0_i32_0 = arith.constant 0 : i32
    %c0_i32_1 = arith.constant 0 : i32
    return %arg0, %c0_i32, %c0_i32_0 : i32, i32, i32
  }
  func.func @transform_3(%arg0: i32) -> (i32, i32, i32) {
    %c0_i32 = arith.constant 0 : i32
    %c0_i32_0 = arith.constant 0 : i32
    %c0_i32_1 = arith.constant 0 : i32
    return %arg0, %c0_i32, %c0_i32_0 : i32, i32, i32
  }
  func.func @transform_4(%arg0: i32) -> (i32, i32, i32) {
    %c0_i32 = arith.constant 0 : i32
    %c0_i32_0 = arith.constant 0 : i32
    %c0_i32_1 = arith.constant 0 : i32
    %c0_i32_2 = arith.constant 0 : i32
    return %c0_i32, %c0_i32_0, %c0_i32_1 : i32, i32, i32
  }
  func.func @transform_5(%arg0: i32) -> (i32, i32, i32) {
    %c0_i32 = arith.constant 0 : i32
    %c0_i32_0 = arith.constant 0 : i32
    %c0_i32_1 = arith.constant 0 : i32
    %c0_i32_2 = arith.constant 0 : i32
    return %c0_i32, %c0_i32_0, %c0_i32_1 : i32, i32, i32
  }
  func.func @transform_6(%arg0: i32) -> (i32, i32) {
    %c0_i32 = arith.constant 0 : i32
    %c0_i32_0 = arith.constant 0 : i32
    %c0_i32_1 = arith.constant 0 : i32
    return %c0_i32, %c0_i32_0 : i32, i32
  }
  func.func @transform_7(%arg0: i32) -> (i32, i32) {
    %c0_i32 = arith.constant 0 : i32
    %c0_i32_0 = arith.constant 0 : i32
    %c0_i32_1 = arith.constant 0 : i32
    return %c0_i32, %c0_i32_0 : i32, i32
  }
  func.func @transform_8(%arg0: i32) -> (i32, i32, i32) {
    %c0_i32 = arith.constant 0 : i32
    %c0_i32_0 = arith.constant 0 : i32
    %c0_i32_1 = arith.constant 0 : i32
    return %arg0, %c0_i32, %c0_i32_0 : i32, i32, i32
  }
}

</mosaic_0001>

<llo_original>
// kernel: tpu_custom_call.1
$region0: #{tpu_custom_call.1}
  #allocation0 [shape = 'u32[]', space=smem, size = 0x4, offset = 0x4, fixed_abs, tag = 'smem constant byte address 0x4 - core index']
  #allocation1 [shape = 'u32[72,128]{1,0:T(1,128)}', space=vmem, size = 0x9000, scoped, tag = 'internal scratch']
  %s0 = inlined_call_operand.vmem [shape: f32[2,8,32], index: 0, kind: input, shape index: {}]
  %s1 = inlined_call_operand.hbm [shape: s32[2,8,8], index: 1, kind: input, shape index: {}]
  %s2 = inlined_call_operand.vmem [shape: f32[2,8,1], index: 2, kind: input, shape index: {}]
  %s3 = inlined_call_operand.hbm [shape: f32[2,1,32], index: 3, kind: input, shape index: {}]
  %s4 = inlined_call_operand.hbm [shape: f32[3,32,32], index: 4, kind: input, shape index: {}]
  %s5 = inlined_call_operand.vmem [shape: f32[3,2,32], index: 5, kind: input, shape index: {}]
  %s6 = inlined_call_operand.hbm [shape: f32[32,192], index: 6, kind: input, shape index: {}]
  %s7 = inlined_call_operand.hbm [shape: f32[192,192], index: 7, kind: input, shape index: {}]
  %s8 = inlined_call_operand.hbm [shape: f32[2,8,32], index: 8, kind: output, shape index: {}]
  %s9 = sld [smem:[#allocation0]]
  $region62: #{tpu_custom_call.1} parent=0
    _
  %s11 = ssub.s32 1, %s9
  %s12 = scalar_select 0, %s11, %s9
  $region1: #{tpu_custom_call.1} parent=0
    #allocation2 [shape = 'u8[8192]{0}', space=vmem, size = 0x2000, scoped, tag = 'input window, operand 1, single buffered']
    #allocation3 [shape = 's32[1]{0}', space=sflag, size = 0x4, scoped, tag = 'scoped memory for tpu_custom_call.1']
    #allocation4 [shape = 's32[1]{0}', space=sflag, size = 0x4, scoped, tag = 'scoped memory for tpu_custom_call.1']
    #allocation5 [shape = 'u8[1024]{0}', space=vmem, size = 0x400, scoped, tag = 'input window, operand 3, single buffered']
    #allocation6 [shape = 's32[1]{0}', space=sflag, size = 0x4, scoped, tag = 'scoped memory for tpu_custom_call.1']
    #allocation7 [shape = 'u8[49152]{0}', space=vmem, size = 0xc000, scoped, tag = 'input window, operand 4, single buffered']
    #allocation8 [shape = 'u8[32768]{0}', space=vmem, size = 0x8000, scoped, tag = 'input window, operand 6, single buffered']
    #allocation9 [shape = 's32[1]{0}', space=sflag, size = 0x4, scoped, tag = 'scoped memory for tpu_custom_call.1']
    #allocation10 [shape = 'u8[196608]{0}', space=vmem, size = 0x30000, scoped, tag = 'input window, operand 7, single buffered']
    #allocation11 [shape = 'u8[8192]{0}', space=vmem, size = 0x2000, scoped, tag = 'output window, operand 0, single buffered']
    %13 = vsyncpa [#allocation3], 0
    %14 = vsyncpa [#allocation6], 0
    %15 = vsyncpa [#allocation9], 0
    %16 = vsyncpa [#allocation4], 0
    // Predicated region
    $region2: #{tpu_custom_call.1} parent=1 // pred_check
      _
    $region3: #{tpu_custom_call.1} parent=1 // pred_check_branch
      %18 = sbr.rel (0) target = $region5
    $region4: #{tpu_custom_call.1} parent=1 // pred_region
      _
    $region5: #{tpu_custom_call.1} parent=1 // pred_fallthru
      _
    // Predicated region
    $region6: #{tpu_custom_call.1} parent=1 // pred_check
      _
    $region7: #{tpu_custom_call.1} parent=1 // pred_check_branch
      %20 = sbr.rel (0) target = $region9
    $region8: #{tpu_custom_call.1} parent=1 // pred_region
      %22 = vsyncadd [#allocation3], 0
      %s23 = sshll.u32 %s1, 4
      %s24 = int_to_ptr.hbm [resolvable:$true] %s23
      %s25 = sshll.u32 [#allocation2], 4
      %s26 = int_to_ptr.vmem [resolvable:$true] %s25
      %31 = dma.hbm_to_vmem [thread:$0]  %s24, 256, %s26, [#allocation3], 128, 128, 8
    $region9: #{tpu_custom_call.1} parent=1 // pred_fallthru
      _
    // Predicated region
    $region10: #{tpu_custom_call.1} parent=1 // pred_check
      _
    $region11: #{tpu_custom_call.1} parent=1 // pred_check_branch
      %33 = sbr.rel (0) target = $region13
    $region12: #{tpu_custom_call.1} parent=1 // pred_region
      _
    $region13: #{tpu_custom_call.1} parent=1 // pred_fallthru
      _
    // Predicated region
    $region14: #{tpu_custom_call.1} parent=1 // pred_check
      _
    $region15: #{tpu_custom_call.1} parent=1 // pred_check_branch
      %35 = sbr.rel (0) target = $region17
    $region16: #{tpu_custom_call.1} parent=1 // pred_region
      %37 = vsyncadd [#allocation6], 0
      %s38 = sshll.u32 %s3, 4
      %s39 = int_to_ptr.hbm [resolvable:$true] %s38
      %s40 = sshll.u32 [#allocation5], 4
      %s41 = int_to_ptr.vmem [resolvable:$true] %s40
      %46 = dma.hbm_to_vmem [thread:$0]  %s39, 32, %s41, [#allocation6], 16, 16, 1
    $region17: #{tpu_custom_call.1} parent=1 // pred_fallthru
      _
    // Predicated region
    $region18: #{tpu_custom_call.1} parent=1 // pred_check
      _
    $region19: #{tpu_custom_call.1} parent=1 // pred_check_branch
      %48 = sbr.rel (0) target = $region21
    $region20: #{tpu_custom_call.1} parent=1 // pred_region
      %50 = vsyncadd [#allocation6], 0
      %s51 = sshll.u32 %s4, 4
      %s52 = int_to_ptr.hbm [resolvable:$true] %s51
      %s53 = sshll.u32 [#allocation7], 4
      %s54 = int_to_ptr.vmem [resolvable:$true] %s53
      %59 = dma.hbm_to_vmem [thread:$0]  %s52, 1536, %s54, [#allocation6], 128, 128, 8
    $region21: #{tpu_custom_call.1} parent=1 // pred_fallthru
      _
    // Predicated region
    $region22: #{tpu_custom_call.1} parent=1 // pred_check
      _
    $region23: #{tpu_custom_call.1} parent=1 // pred_check_branch
      %61 = sbr.rel (0) target = $region25
    $region24: #{tpu_custom_call.1} parent=1 // pred_region
      _
    $region25: #{tpu_custom_call.1} parent=1 // pred_fallthru
      _
    // Predicated region
    $region26: #{tpu_custom_call.1} parent=1 // pred_check
      _
    $region27: #{tpu_custom_call.1} parent=1 // pred_check_branch
      %63 = sbr.rel (0) target = $region29
    $region28: #{tpu_custom_call.1} parent=1 // pred_region
      %65 = vsyncadd [#allocation9], 0
      %s66 = sshll.u32 %s6, 4
      %s67 = int_to_ptr.hbm [resolvable:$true] %s66
      %s68 = sshll.u32 [#allocation8], 4
      %s69 = int_to_ptr.vmem [resolvable:$true] %s68
      %74 = dma.hbm_to_vmem [thread:$0]  %s67, 1024, %s69, [#allocation9], 256, 256, 16
    $region29: #{tpu_custom_call.1} parent=1 // pred_fallthru
      _
    // Predicated region
    $region30: #{tpu_custom_call.1} parent=1 // pred_check
      _
    $region31: #{tpu_custom_call.1} parent=1 // pred_check_branch
      %76 = sbr.rel (0) target = $region33
    $region32: #{tpu_custom_call.1} parent=1 // pred_region
      %78 = vsyncadd [#allocation9], 0
      %s79 = sshll.u32 %s7, 4
      %s80 = int_to_ptr.hbm [resolvable:$true] %s79
      %s81 = sshll.u32 [#allocation10], 4
      %s82 = int_to_ptr.vmem [resolvable:$true] %s81
      %87 = dma.hbm_to_vmem [thread:$0]  %s80, 6144, %s82, [#allocation9], 256, 256, 16
    $region33: #{tpu_custom_call.1} parent=1 // pred_fallthru
      _
    // Predicated region
    $region34: #{tpu_custom_call.1} parent=1 // pred_check
      _
    $region35: #{tpu_custom_call.1} parent=1 // pred_check_branch
      %89 = sbr.rel (0) target = $region37
    $region36: #{tpu_custom_call.1} parent=1 // pred_region
      %91 = dma.done [#allocation3], 256
    $region37: #{tpu_custom_call.1} parent=1 // pred_fallthru
      _
    // Predicated region
    $region38: #{tpu_custom_call.1} parent=1 // pred_check
      _
    $region39: #{tpu_custom_call.1} parent=1 // pred_check_branch
      %93 = sbr.rel (0) target = $region41
    $region40: #{tpu_custom_call.1} parent=1 // pred_region
      %95 = dma.done [#allocation6], 32
    $region41: #{tpu_custom_call.1} parent=1 // pred_fallthru
      _
    // Predicated region
    $region42: #{tpu_custom_call.1} parent=1 // pred_check
      _
    $region43: #{tpu_custom_call.1} parent=1 // pred_check_branch
      %97 = sbr.rel (0) target = $region45
    $region44: #{tpu_custom_call.1} parent=1 // pred_region
      %99 = dma.done [#allocation6], 1536
    $region45: #{tpu_custom_call.1} parent=1 // pred_fallthru
      _
    // Predicated region
    $region46: #{tpu_custom_call.1} parent=1 // pred_check
      _
    $region47: #{tpu_custom_call.1} parent=1 // pred_check_branch
      %101 = sbr.rel (0) target = $region49
    $region48: #{tpu_custom_call.1} parent=1 // pred_region
      %103 = dma.done [#allocation9], 1024
    $region49: #{tpu_custom_call.1} parent=1 // pred_fallthru
      _
    // Predicated region
    $region50: #{tpu_custom_call.1} parent=1 // pred_check
      _
    $region51: #{tpu_custom_call.1} parent=1 // pred_check_branch
      %105 = sbr.rel (0) target = $region53
    $region52: #{tpu_custom_call.1} parent=1 // pred_region
      %107 = dma.done [#allocation9], 6144
    $region53: #{tpu_custom_call.1} parent=1 // pred_fallthru
      _
    %v108 = vld [vmem:[%s0] sm:$0xff]
    %v109 = vld [vmem:[%s0 + $0x8] sm:$0xff]
    %v110 = vld [vmem:[#allocation2] sm:$0xff]
    %v111 = vld [vmem:[#allocation2 + $0x8] sm:$0xff]
    %v112 = vld [vmem:[%s2] sm:$0xff]
    %v113 = vld [vmem:[%s2 + $0x8] sm:$0xff]
    %v114 = vld [vmem:[#allocation5] sm:$0x1]
    %v115 = vld [vmem:[#allocation5 + $0x1] sm:$0x1]
    %v116 = vld [vmem:[#allocation8] sm:$0xff]
    %v117 = vld [vmem:[#allocation8 + $0x8] sm:$0xff]
    %v118 = vld [vmem:[#allocation8 + $0x10] sm:$0xff]
    %v119 = vld [vmem:[#allocation8 + $0x18] sm:$0xff]
    %v120 = vld [vmem:[#allocation8 + $0x20] sm:$0xff]
    %v121 = vld [vmem:[#allocation8 + $0x28] sm:$0xff]
    %v122 = vld [vmem:[#allocation8 + $0x30] sm:$0xff]
    %v123 = vld [vmem:[#allocation8 + $0x38] sm:$0xff]
    %126 = vst [vmem:[#allocation1] ss:$9 sm:$0xff] %v114
    %s127 = scalar_lea.vmem [#allocation1], 1
    %128 = vst [vmem:[%s127] ss:$9 sm:$0xff] %v115
    %v129 = vld [vmem:[#allocation1] sm:$0xff]
    %vm130 = vcmask 261120
    %v131 = vsel %vm130, %v129, 0
    %133 = vmatpush.msra.mxu0 0.0
    %134 = vmatpush.msra.mxu0 0.0
    %135 = vmatpush.msra.mxu0 0.0
    %136 = vmatpush.msra.mxu0 0.0
    %137 = vmatpush.msra.mxu0 0.0
    %138 = vmatpush.msra.mxu0 0.0
    %139 = vmatpush.msra.mxu0 0.0
    %140 = vmatpush.msra.mxu0 0.0
    %141 = vmatpush.msra.mxu0 0.0
    %142 = vmatpush.msra.mxu0 0.0
    %143 = vmatpush.msra.mxu0 0.0
    %144 = vmatpush.msra.mxu0 0.0
    %145 = vmatpush.msra.mxu0 %v122
    %146 = vmatpush.msra.mxu0 %v120
    %147 = vmatpush.msra.mxu0 %v118
    %148 = vmatpush.msra.mxu0 %v116
    %149 = vmatmul.f32.gmra.mxu0 %v131
    %v150 = vpop.f32.mrf.mxu0
    %v151 = vadd.f32 0.0, %v150
    %152 = vdwg.mxu0
    %153 = vmatpush.msra.mxu0 0.0
    %154 = vmatpush.msra.mxu0 0.0
    %155 = vmatpush.msra.mxu0 0.0
    %156 = vmatpush.msra.mxu0 0.0
    %157 = vmatpush.msra.mxu0 0.0
    %158 = vmatpush.msra.mxu0 0.0
    %159 = vmatpush.msra.mxu0 0.0
    %160 = vmatpush.msra.mxu0 0.0
    %161 = vmatpush.msra.mxu0 0.0
    %162 = vmatpush.msra.mxu0 0.0
    %163 = vmatpush.msra.mxu0 0.0
    %164 = vmatpush.msra.mxu0 0.0
    %165 = vmatpush.msra.mxu0 %v123
    %166 = vmatpush.msra.mxu0 %v121
    %167 = vmatpush.msra.mxu0 %v119
    %168 = vmatpush.msra.mxu0 %v117
    %169 = vmatmul.f32.gmra.mxu0 %v131
    %v170 = vpop.f32.mrf.mxu0
    %v171 = vadd.f32 0.0, %v170
    %172 = vdwg.mxu0
    %v173 = vmax.f32 %v151, 0.0
    %v174 = vmax.f32 %v171, 0.0
    %v175 = vld [vmem:[#allocation10] sm:$0xff]
    %v176 = vld [vmem:[#allocation10 + $0x8] sm:$0xff]
    %v177 = vld [vmem:[#allocation10 + $0x10] sm:$0xff]
    %v178 = vld [vmem:[#allocation10 + $0x18] sm:$0xff]
    %v179 = vld [vmem:[#allocation10 + $0x20] sm:$0xff]
    %v180 = vld [vmem:[#allocation10 + $0x28] sm:$0xff]
    %v181 = vld [vmem:[#allocation10 + $0x30] sm:$0xff]
    %v182 = vld [vmem:[#allocation10 + $0x38] sm:$0xff]
    %v183 = vld [vmem:[#allocation10 + $0x40] sm:$0xff]
    %v184 = vld [vmem:[#allocation10 + $0x48] sm:$0xff]
    %v185 = vld [vmem:[#allocation10 + $0x50] sm:$0xff]
    %v186 = vld [vmem:[#allocation10 + $0x58] sm:$0xff]
    %v187 = vld [vmem:[#allocation10 + $0x60] sm:$0xff]
    %v188 = vld [vmem:[#allocation10 + $0x68] sm:$0xff]
    %v189 = vld [vmem:[#allocation10 + $0x70] sm:$0xff]
    %v190 = vld [vmem:[#allocation10 + $0x78] sm:$0xff]
    %v191 = vld [vmem:[#allocation10 + $0x80] sm:$0xff]
    %v192 = vld [vmem:[#allocation10 + $0x88] sm:$0xff]
    %v193 = vld [vmem:[#allocation10 + $0x90] sm:$0xff]
    %v194 = vld [vmem:[#allocation10 + $0x98] sm:$0xff]
    %v195 = vld [vmem:[#allocation10 + $0xa0] sm:$0xff]
    %v196 = vld [vmem:[#allocation10 + $0xa8] sm:$0xff]
    %v197 = vld [vmem:[#allocation10 + $0xb0] sm:$0xff]
    %v198 = vld [vmem:[#allocation10 + $0xb8] sm:$0xff]
    %v199 = vld [vmem:[#allocation10 + $0xc0] sm:$0xff]
    %v200 = vld [vmem:[#allocation10 + $0xc8] sm:$0xff]
    %v201 = vld [vmem:[#allocation10 + $0xd0] sm:$0xff]
    %v202 = vld [vmem:[#allocation10 + $0xd8] sm:$0xff]
    %v203 = vld [vmem:[#allocation10 + $0xe0] sm:$0xff]
    %v204 = vld [vmem:[#allocation10 + $0xe8] sm:$0xff]
    %v205 = vld [vmem:[#allocation10 + $0xf0] sm:$0xff]
    %v206 = vld [vmem:[#allocation10 + $0xf8] sm:$0xff]
    %v207 = vld [vmem:[#allocation10 + $0x100] sm:$0xff]
    %v208 = vld [vmem:[#allocation10 + $0x108] sm:$0xff]
    %v209 = vld [vmem:[#allocation10 + $0x110] sm:$0xff]
    %v210 = vld [vmem:[#allocation10 + $0x118] sm:$0xff]
    %v211 = vld [vmem:[#allocation10 + $0x120] sm:$0xff]
    %v212 = vld [vmem:[#allocation10 + $0x128] sm:$0xff]
    %v213 = vld [vmem:[#allocation10 + $0x130] sm:$0xff]
    %v214 = vld [vmem:[#allocation10 + $0x138] sm:$0xff]
    %v215 = vld [vmem:[#allocation10 + $0x140] sm:$0xff]
    %v216 = vld [vmem:[#allocation10 + $0x148] sm:$0xff]
    %v217 = vld [vmem:[#allocation10 + $0x150] sm:$0xff]
    %v218 = vld [vmem:[#allocation10 + $0x158] sm:$0xff]
    %v219 = vld [vmem:[#allocation10 + $0x160] sm:$0xff]
    %v220 = vld [vmem:[#allocation10 + $0x168] sm:$0xff]
    %v221 = vld [vmem:[#allocation10 + $0x170] sm:$0xff]
    %v222 = vld [vmem:[#allocation10 + $0x178] sm:$0xff]
    %vm223 = vcmask 523264
    %v225 = vsel %vm223, %v174, 0
    %227 = vmatpush.msra.mxu0 %v205
    %228 = vmatpush.msra.mxu0 %v203
    %229 = vmatpush.msra.mxu0 %v201
    %230 = vmatpush.msra.mxu0 %v199
    %231 = vmatpush.msra.mxu0 %v197
    %232 = vmatpush.msra.mxu0 %v195
    %233 = vmatpush.msra.mxu0 %v193
    %234 = vmatpush.msra.mxu0 %v191
    %235 = vmatpush.msra.mxu0 %v189
    %236 = vmatpush.msra.mxu0 %v187
    %237 = vmatpush.msra.mxu0 %v185
    %238 = vmatpush.msra.mxu0 %v183
    %239 = vmatpush.msra.mxu0 %v181
    %240 = vmatpush.msra.mxu0 %v179
    %241 = vmatpush.msra.mxu0 %v177
    %242 = vmatpush.msra.mxu0 %v175
    %243 = vmatmul.f32.gmra.mxu0 %v173
    %v244 = vpop.f32.mrf.mxu0
    %v245 = vadd.f32 0.0, %v244
    %246 = vdwg.mxu0
    %247 = vmatpush.msra.mxu0 0.0
    %248 = vmatpush.msra.mxu0 0.0
    %249 = vmatpush.msra.mxu0 0.0
    %250 = vmatpush.msra.mxu0 0.0
    %251 = vmatpush.msra.mxu0 0.0
    %252 = vmatpush.msra.mxu0 0.0
    %253 = vmatpush.msra.mxu0 0.0
    %254 = vmatpush.msra.mxu0 0.0
    %255 = vmatpush.msra.mxu0 %v221
    %256 = vmatpush.msra.mxu0 %v219
    %257 = vmatpush.msra.mxu0 %v217
    %258 = vmatpush.msra.mxu0 %v215
    %259 = vmatpush.msra.mxu0 %v213
    %260 = vmatpush.msra.mxu0 %v211
    %261 = vmatpush.msra.mxu0 %v209
    %262 = vmatpush.msra.mxu0 %v207
    %263 = vmatmul.f32.gmra.mxu0 %v225
    %v264 = vpop.f32.mrf.mxu0
    %v265 = vadd.f32 %v245, %v264
    %266 = vdwg.mxu0
    %267 = vmatpush.msra.mxu0 %v206
    %268 = vmatpush.msra.mxu0 %v204
    %269 = vmatpush.msra.mxu0 %v202
    %270 = vmatpush.msra.mxu0 %v200
    %271 = vmatpush.msra.mxu0 %v198
    %272 = vmatpush.msra.mxu0 %v196
    %273 = vmatpush.msra.mxu0 %v194
    %274 = vmatpush.msra.mxu0 %v192
    %275 = vmatpush.msra.mxu0 %v190
    %276 = vmatpush.msra.mxu0 %v188
    %277 = vmatpush.msra.mxu0 %v186
    %278 = vmatpush.msra.mxu0 %v184
    %279 = vmatpush.msra.mxu0 %v182
    %280 = vmatpush.msra.mxu0 %v180
    %281 = vmatpush.msra.mxu0 %v178
    %282 = vmatpush.msra.mxu0 %v176
    %283 = vmatmul.f32.gmra.mxu0 %v173
    %v284 = vpop.f32.mrf.mxu0
    %v285 = vadd.f32 0.0, %v284
    %286 = vdwg.mxu0
    %287 = vmatpush.msra.mxu0 0.0
    %288 = vmatpush.msra.mxu0 0.0
    %289 = vmatpush.msra.mxu0 0.0
    %290 = vmatpush.msra.mxu0 0.0
    %291 = vmatpush.msra.mxu0 0.0
    %292 = vmatpush.msra.mxu0 0.0
    %293 = vmatpush.msra.mxu0 0.0
    %294 = vmatpush.msra.mxu0 0.0
    %295 = vmatpush.msra.mxu0 %v222
    %296 = vmatpush.msra.mxu0 %v220
    %297 = vmatpush.msra.mxu0 %v218
    %298 = vmatpush.msra.mxu0 %v216
    %299 = vmatpush.msra.mxu0 %v214
    %300 = vmatpush.msra.mxu0 %v212
    %301 = vmatpush.msra.mxu0 %v210
    %302 = vmatpush.msra.mxu0 %v208
    %303 = vmatmul.f32.gmra.mxu0 %v225
    %v304 = vpop.f32.mrf.mxu0
    %v305 = vadd.f32 %v285, %v304
    %306 = vdwg.mxu0
    %v307 = vxor.u32 %v265, 2147483648
    %v308 = vxor.u32 %v305, 2147483648
    %v309 = vmul.f32 %v307, 1.442695
    %v310 = vpow.pop %v309
    %v311 = vmul.f32 %v308, 1.442695
    %v312 = vpow.pop %v311
    %v313 = vadd.f32 %v310, 1.0
    %v314 = vadd.f32 %v312, 1.0
    %v315 = vrcp.pop %v313
    %v316 = vmul.f32 %v313, %v315
    %v317 = vsub.f32 1.0, %v316
    %v318 = vmul.f32 %v315, %v317
    %v319 = vadd.f32 %v315, %v318
    %vm320 = vweird.f32 %v313
    %vm321 = vweird.f32 %v315
    %vm322 = vmor %vm320, %vm321
    %v323 = vsel %vm322, %v315, %v319
    %v324 = vand.u32 2147483647, %v313
    %vm325 = vcmp.eq.f32.partialorder %v324, 8.507059e+37
    %v326 = vand.u32 %v313, 2147483648
    %v327 = vor.u32 1.1754944e-38, %v326
    %v328 = vsel %vm325, %v327, %v323
    %v329 = vmul.f32 1.0, %v328
    %v330 = vrcp.pop %v314
    %v331 = vmul.f32 %v314, %v330
    %v332 = vsub.f32 1.0, %v331
    %v333 = vmul.f32 %v330, %v332
    %v334 = vadd.f32 %v330, %v333
    %vm335 = vweird.f32 %v314
    %vm336 = vweird.f32 %v330
    %vm337 = vmor %vm335, %vm336
    %v338 = vsel %vm337, %v330, %v334
    %v339 = vand.u32 2147483647, %v314
    %vm340 = vcmp.eq.f32.partialorder %v339, 8.507059e+37
    %v341 = vand.u32 %v314, 2147483648
    %v342 = vor.u32 1.1754944e-38, %v341
    %v343 = vsel %vm340, %v342, %v338
    %v344 = vmul.f32 1.0, %v343
    %v345 = vld [vmem:[%s5] sm:$0x3]
    %v346 = vld [vmem:[#allocation7] sm:$0xff]
    %v347 = vld [vmem:[#allocation7 + $0x8] sm:$0xff]
    %v348 = vld [vmem:[#allocation7 + $0x10] sm:$0xff]
    %v349 = vld [vmem:[#allocation7 + $0x18] sm:$0xff]
    %v350 = vperm.slane %v345, 0
    %v351 = vmul.f32 %v350, %v329
    %v352 = vperm.slane %v345, 1
    %354 = vrot.lane.b32.xlu0 %v329, 96
    %v355 = vpop.permute.xlu0 %354
    %v357 = vmul.f32 %v352, %v355
    %v359 = vsel %vm130, %v351, 0
    %v362 = vsel %vm130, %v346, 0
    %v365 = vsel %vm130, %v347, 0
    %v368 = vsel %vm130, %v348, 0
    %v371 = vsel %vm130, %v349, 0
    %373 = vmatpush.xpose.msra.mxu0 0.0
    %374 = vmatpush.xpose.msra.mxu0 0.0
    %375 = vmatpush.xpose.msra.mxu0 0.0
    %376 = vmatpush.xpose.msra.mxu0 0.0
    %377 = vmatpush.xpose.msra.mxu0 0.0
    %378 = vmatpush.xpose.msra.mxu0 0.0
    %379 = vmatpush.xpose.msra.mxu0 0.0
    %380 = vmatpush.xpose.msra.mxu0 0.0
    %381 = vmatpush.xpose.msra.mxu0 0.0
    %382 = vmatpush.xpose.msra.mxu0 0.0
    %383 = vmatpush.xpose.msra.mxu0 0.0
    %384 = vmatpush.xpose.msra.mxu0 0.0
    %385 = vmatpush.xpose.msra.mxu0 %v371
    %386 = vmatpush.xpose.msra.mxu0 %v368
    %387 = vmatpush.xpose.msra.mxu0 %v365
    %388 = vmatpush.xpose.msra.mxu0 %v362
    %389 = vmatmul.f32.gmra.mxu0 %v359
    %v390 = vpop.f32.mrf.mxu0
    %v391 = vadd.f32 0.0, %v390
    %392 = vdwg.mxu0
    %v394 = vsel %vm130, %v357, 0
    %396 = vmatpush.xpose.msra.mxu0 0.0
    %397 = vmatpush.xpose.msra.mxu0 0.0
    %398 = vmatpush.xpose.msra.mxu0 0.0
    %399 = vmatpush.xpose.msra.mxu0 0.0
    %400 = vmatpush.xpose.msra.mxu0 0.0
    %401 = vmatpush.xpose.msra.mxu0 0.0
    %402 = vmatpush.xpose.msra.mxu0 0.0
    %403 = vmatpush.xpose.msra.mxu0 0.0
    %404 = vmatpush.xpose.msra.mxu0 0.0
    %405 = vmatpush.xpose.msra.mxu0 0.0
    %406 = vmatpush.xpose.msra.mxu0 0.0
    %407 = vmatpush.xpose.msra.mxu0 0.0
    %408 = vmatpush.xpose.msra.mxu0 %v371
    %409 = vmatpush.xpose.msra.mxu0 %v368
    %410 = vmatpush.xpose.msra.mxu0 %v365
    %411 = vmatpush.xpose.msra.mxu0 %v362
    %412 = vmatmul.f32.gmra.mxu0 %v394
    %v413 = vpop.f32.mrf.mxu0
    %v414 = vadd.f32 0.0, %v413
    %415 = vdwg.mxu0
    %v417 = vrot.slane %v391, 1
    %v420 = vrot.slane %v414, 1
    %s422 = scalar_lea.vmem %s5, 2
    %v423 = vld [vmem:[%s422] sm:$0x3]
    %s424 = scalar_lea.vmem [#allocation7], 32
    %v425 = vld [vmem:[%s424] sm:$0xff]
    %v426 = vld [vmem:[%s424 + $0x8] sm:$0xff]
    %v427 = vld [vmem:[%s424 + $0x10] sm:$0xff]
    %v428 = vld [vmem:[%s424 + $0x18] sm:$0xff]
    %v429 = vperm.slane %v423, 0
    %430 = vrot.lane.b32.xlu0 %v329, 64
    %v431 = vpop.permute.xlu0 %430
    %v433 = vmul.f32 %v429, %v431
    %v434 = vperm.slane %v423, 1
    %435 = vrot.lane.b32.xlu0 %v329, 32
    %v436 = vpop.permute.xlu0 %435
    %v438 = vmul.f32 %v434, %v436
    %v440 = vsel %vm130, %v433, 0
    %v443 = vsel %vm130, %v425, 0
    %v446 = vsel %vm130, %v426, 0
    %v449 = vsel %vm130, %v427, 0
    %v452 = vsel %vm130, %v428, 0
    %454 = vmatpush.xpose.msra.mxu0 0.0
    %455 = vmatpush.xpose.msra.mxu0 0.0
    %456 = vmatpush.xpose.msra.mxu0 0.0
    %457 = vmatpush.xpose.msra.mxu0 0.0
    %458 = vmatpush.xpose.msra.mxu0 0.0
    %459 = vmatpush.xpose.msra.mxu0 0.0
    %460 = vmatpush.xpose.msra.mxu0 0.0
    %461 = vmatpush.xpose.msra.mxu0 0.0
    %462 = vmatpush.xpose.msra.mxu0 0.0
    %463 = vmatpush.xpose.msra.mxu0 0.0
    %464 = vmatpush.xpose.msra.mxu0 0.0
    %465 = vmatpush.xpose.msra.mxu0 0.0
    %466 = vmatpush.xpose.msra.mxu0 %v452
    %467 = vmatpush.xpose.msra.mxu0 %v449
    %468 = vmatpush.xpose.msra.mxu0 %v446
    %469 = vmatpush.xpose.msra.mxu0 %v443
    %470 = vmatmul.f32.gmra.mxu0 %v440
    %v471 = vpop.f32.mrf.mxu0
    %v472 = vadd.f32 0.0, %v471
    %473 = vdwg.mxu0
    %v475 = vsel %vm130, %v438, 0
    %477 = vmatpush.xpose.msra.mxu0 0.0
    %478 = vmatpush.xpose.msra.mxu0 0.0
    %479 = vmatpush.xpose.msra.mxu0 0.0
    %480 = vmatpush.xpose.msra.mxu0 0.0
    %481 = vmatpush.xpose.msra.mxu0 0.0
    %482 = vmatpush.xpose.msra.mxu0 0.0
    %483 = vmatpush.xpose.msra.mxu0 0.0
    %484 = vmatpush.xpose.msra.mxu0 0.0
    %485 = vmatpush.xpose.msra.mxu0 0.0
    %486 = vmatpush.xpose.msra.mxu0 0.0
    %487 = vmatpush.xpose.msra.mxu0 0.0
    %488 = vmatpush.xpose.msra.mxu0 0.0
    %489 = vmatpush.xpose.msra.mxu0 %v452
    %490 = vmatpush.xpose.msra.mxu0 %v449
    %491 = vmatpush.xpose.msra.mxu0 %v446
    %492 = vmatpush.xpose.msra.mxu0 %v443
    %493 = vmatmul.f32.gmra.mxu0 %v475
    %v494 = vpop.f32.mrf.mxu0
    %v495 = vadd.f32 0.0, %v494
    %496 = vdwg.mxu0
    %v498 = vrot.slane %v472, 1
    %v500 = vrot.slane %v495, 1
    %s501 = scalar_lea.vmem %s5, 4
    %v502 = vld [vmem:[%s501] sm:$0x3]
    %s503 = scalar_lea.vmem [#allocation7], 64
    %v504 = vld [vmem:[%s503] sm:$0xff]
    %v505 = vld [vmem:[%s503 + $0x8] sm:$0xff]
    %v506 = vld [vmem:[%s503 + $0x10] sm:$0xff]
    %v507 = vld [vmem:[%s503 + $0x18] sm:$0xff]
    %v508 = vperm.slane %v502, 0
    %v509 = vmul.f32 %v508, %v344
    %v510 = vperm.slane %v502, 1
    %512 = vrot.lane.b32.xlu0 %v344, 96
    %v513 = vpop.permute.xlu0 %512
    %v515 = vmul.f32 %v510, %v513
    %v517 = vsel %vm130, %v509, 0
    %v520 = vsel %vm130, %v504, 0
    %v523 = vsel %vm130, %v505, 0
    %v526 = vsel %vm130, %v506, 0
    %v529 = vsel %vm130, %v507, 0
    %531 = vmatpush.xpose.msra.mxu0 0.0
    %532 = vmatpush.xpose.msra.mxu0 0.0
    %533 = vmatpush.xpose.msra.mxu0 0.0
    %534 = vmatpush.xpose.msra.mxu0 0.0
    %535 = vmatpush.xpose.msra.mxu0 0.0
    %536 = vmatpush.xpose.msra.mxu0 0.0
    %537 = vmatpush.xpose.msra.mxu0 0.0
    %538 = vmatpush.xpose.msra.mxu0 0.0
    %539 = vmatpush.xpose.msra.mxu0 0.0
    %540 = vmatpush.xpose.msra.mxu0 0.0
    %541 = vmatpush.xpose.msra.mxu0 0.0
    %542 = vmatpush.xpose.msra.mxu0 0.0
    %543 = vmatpush.xpose.msra.mxu0 %v529
    %544 = vmatpush.xpose.msra.mxu0 %v526
    %545 = vmatpush.xpose.msra.mxu0 %v523
    %546 = vmatpush.xpose.msra.mxu0 %v520
    %547 = vmatmul.f32.gmra.mxu0 %v517
    %v548 = vpop.f32.mrf.mxu0
    %v549 = vadd.f32 0.0, %v548
    %550 = vdwg.mxu0
    %v552 = vsel %vm130, %v515, 0
    %554 = vmatpush.xpose.msra.mxu0 0.0
    %555 = vmatpush.xpose.msra.mxu0 0.0
    %556 = vmatpush.xpose.msra.mxu0 0.0
    %557 = vmatpush.xpose.msra.mxu0 0.0
    %558 = vmatpush.xpose.msra.mxu0 0.0
    %559 = vmatpush.xpose.msra.mxu0 0.0
    %560 = vmatpush.xpose.msra.mxu0 0.0
    %561 = vmatpush.xpose.msra.mxu0 0.0
    %562 = vmatpush.xpose.msra.mxu0 0.0
    %563 = vmatpush.xpose.msra.mxu0 0.0
    %564 = vmatpush.xpose.msra.mxu0 0.0
    %565 = vmatpush.xpose.msra.mxu0 0.0
    %566 = vmatpush.xpose.msra.mxu0 %v529
    %567 = vmatpush.xpose.msra.mxu0 %v526
    %568 = vmatpush.xpose.msra.mxu0 %v523
    %569 = vmatpush.xpose.msra.mxu0 %v520
    %570 = vmatmul.f32.gmra.mxu0 %v552
    %v571 = vpop.f32.mrf.mxu0
    %v572 = vadd.f32 0.0, %v571
    %573 = vdwg.mxu0
    %v575 = vrot.slane %v549, 1
    %v577 = vrot.slane %v572, 1
    %v578 = vperm.slane %v472, 0
    %v579 = vperm.slane %v498, 0
    %v582 = vperm.slane %v549, 0
    %v583 = vperm.slane %v575, 0
    %vm586 = vcmask 1040384
    %v587 = vsel %vm586, %v391, %v578
    %v588 = vsel %vm586, %v417, %v579
    %vm589 = vcmask 1041408
    %v590 = vsel %vm589, %v587, %v582
    %v591 = vsel %vm589, %v588, %v583
    %v592 = vperm.slane %v495, 0
    %v593 = vperm.slane %v500, 0
    %v596 = vperm.slane %v572, 0
    %v597 = vperm.slane %v577, 0
    %v600 = vsel %vm586, %v414, %v592
    %v601 = vsel %vm586, %v420, %v593
    %v602 = vsel %vm589, %v600, %v596
    %v603 = vsel %vm589, %v601, %v597
    %v605 = vsel %vm130, %v108, 0
    %v608 = vsel %vm130, %v590, 0
    %610 = vmatpush.xpose.msra.mxu0 0.0
    %611 = vmatpush.xpose.msra.mxu0 0.0
    %612 = vmatpush.xpose.msra.mxu0 0.0
    %613 = vmatpush.xpose.msra.mxu0 0.0
    %614 = vmatpush.xpose.msra.mxu0 0.0
    %615 = vmatpush.xpose.msra.mxu0 0.0
    %616 = vmatpush.xpose.msra.mxu0 0.0
    %617 = vmatpush.xpose.msra.mxu0 0.0
    %618 = vmatpush.xpose.msra.mxu0 0.0
    %619 = vmatpush.xpose.msra.mxu0 0.0
    %620 = vmatpush.xpose.msra.mxu0 0.0
    %621 = vmatpush.xpose.msra.mxu0 0.0
    %622 = vmatpush.xpose.msra.mxu0 0.0
    %623 = vmatpush.xpose.msra.mxu0 0.0
    %624 = vmatpush.xpose.msra.mxu0 0.0
    %625 = vmatpush.xpose.msra.mxu0 %v608
    %626 = vmatmul.f32.gmra.mxu0 %v605
    %v627 = vpop.f32.mrf.mxu0
    %v628 = vadd.f32 0.0, %v627
    %629 = vdwg.mxu0
    %v631 = vsel %vm130, %v109, 0
    %v634 = vsel %vm130, %v591, 0
    %636 = vmatpush.xpose.msra.mxu0 0.0
    %637 = vmatpush.xpose.msra.mxu0 0.0
    %638 = vmatpush.xpose.msra.mxu0 0.0
    %639 = vmatpush.xpose.msra.mxu0 0.0
    %640 = vmatpush.xpose.msra.mxu0 0.0
    %641 = vmatpush.xpose.msra.mxu0 0.0
    %642 = vmatpush.xpose.msra.mxu0 0.0
    %643 = vmatpush.xpose.msra.mxu0 0.0
    %644 = vmatpush.xpose.msra.mxu0 0.0
    %645 = vmatpush.xpose.msra.mxu0 0.0
    %646 = vmatpush.xpose.msra.mxu0 0.0
    %647 = vmatpush.xpose.msra.mxu0 0.0
    %648 = vmatpush.xpose.msra.mxu0 0.0
    %649 = vmatpush.xpose.msra.mxu0 0.0
    %650 = vmatpush.xpose.msra.mxu0 0.0
    %651 = vmatpush.xpose.msra.mxu0 %v634
    %652 = vmatmul.f32.gmra.mxu0 %v631
    %v653 = vpop.f32.mrf.mxu0
    %v654 = vadd.f32 0.0, %v653
    %655 = vdwg.mxu0
    %v657 = vsel %vm130, %v602, 0
    %659 = vmatpush.xpose.msra.mxu0 0.0
    %660 = vmatpush.xpose.msra.mxu0 0.0
    %661 = vmatpush.xpose.msra.mxu0 0.0
    %662 = vmatpush.xpose.msra.mxu0 0.0
    %663 = vmatpush.xpose.msra.mxu0 0.0
    %664 = vmatpush.xpose.msra.mxu0 0.0
    %665 = vmatpush.xpose.msra.mxu0 0.0
    %666 = vmatpush.xpose.msra.mxu0 0.0
    %667 = vmatpush.xpose.msra.mxu0 0.0
    %668 = vmatpush.xpose.msra.mxu0 0.0
    %669 = vmatpush.xpose.msra.mxu0 0.0
    %670 = vmatpush.xpose.msra.mxu0 0.0
    %671 = vmatpush.xpose.msra.mxu0 0.0
    %672 = vmatpush.xpose.msra.mxu0 0.0
    %673 = vmatpush.xpose.msra.mxu0 0.0
    %674 = vmatpush.xpose.msra.mxu0 %v605
    %675 = vmatmul.f32.gmra.mxu0 %v657
    %v676 = vpop.f32.mrf.mxu0
    %v677 = vadd.f32 0.0, %v676
    %678 = vdwg.mxu0
    %v680 = vsel %vm130, %v603, 0
    %682 = vmatpush.xpose.msra.mxu0 0.0
    %683 = vmatpush.xpose.msra.mxu0 0.0
    %684 = vmatpush.xpose.msra.mxu0 0.0
    %685 = vmatpush.xpose.msra.mxu0 0.0
    %686 = vmatpush.xpose.msra.mxu0 0.0
    %687 = vmatpush.xpose.msra.mxu0 0.0
    %688 = vmatpush.xpose.msra.mxu0 0.0
    %689 = vmatpush.xpose.msra.mxu0 0.0
    %690 = vmatpush.xpose.msra.mxu0 0.0
    %691 = vmatpush.xpose.msra.mxu0 0.0
    %692 = vmatpush.xpose.msra.mxu0 0.0
    %693 = vmatpush.xpose.msra.mxu0 0.0
    %694 = vmatpush.xpose.msra.mxu0 0.0
    %695 = vmatpush.xpose.msra.mxu0 0.0
    %696 = vmatpush.xpose.msra.mxu0 0.0
    %697 = vmatpush.xpose.msra.mxu0 %v631
    %698 = vmatmul.f32.gmra.mxu0 %v680
    %v699 = vpop.f32.mrf.mxu0
    %v700 = vadd.f32 0.0, %v699
    %701 = vdwg.mxu0
    %703 = vset.pattern.permute.xlu0 0
    %704 = vperm.xlu0 %703, %v628
    %v705 = vpop.permute.xlu0 %704
    %708 = vset.pattern.permute.xlu0 0
    %709 = vperm.xlu0 %708, %v654
    %v710 = vpop.permute.xlu0 %709
    %v712 = vperm.slane %v677, 0
    %v713 = vperm.slane %v700, 0
    %v714 = vadd.f32 %v705, %v712
    %v715 = vadd.f32 %v710, %v713
    %vm716 = vcmp.gt.f32.partialorder %v714, 0.0
    %vm717 = vcmp.gt.f32.partialorder %v715, 0.0
    %v718 = vmul.f32 %v714, 0.2
    %v719 = vmul.f32 %v715, 0.2
    %v720 = vsel %vm716, %v714, %v718
    %v721 = vsel %vm717, %v715, %v719
    %vm722 = vcmp.eq.s32.totalorder %v110, 1
    %vm723 = vcmp.eq.s32.totalorder %v111, 1
    %v724 = vsel %vm722, %v720, 0.0
    %v725 = vsel %vm723, %v721, 0.0
    %v726 = vadd.f32 %v724, 0.0
    %v727 = vadd.f32 %v725, 0.0
    %728 = vset.pattern.permute.xlu0 1
    %729 = vperm.xlu0 %728, %v628
    %v730 = vpop.permute.xlu0 %729
    %732 = vset.pattern.permute.xlu0 1
    %733 = vperm.xlu0 %732, %v654
    %v734 = vpop.permute.xlu0 %733
    %v736 = vperm.slane %v677, 1
    %v737 = vperm.slane %v700, 1
    %v738 = vadd.f32 %v730, %v736
    %v739 = vadd.f32 %v734, %v737
    %vm740 = vcmp.gt.f32.partialorder %v738, 0.0
    %vm741 = vcmp.gt.f32.partialorder %v739, 0.0
    %v742 = vmul.f32 %v738, 0.2
    %v743 = vmul.f32 %v739, 0.2
    %v744 = vsel %vm740, %v738, %v742
    %v745 = vsel %vm741, %v739, %v743
    %vm746 = vcmp.eq.s32.totalorder %v110, 2
    %vm747 = vcmp.eq.s32.totalorder %v111, 2
    %v748 = vsel %vm746, %v744, 0.0
    %v749 = vsel %vm747, %v745, 0.0
    %v750 = vadd.f32 %v726, %v748
    %v751 = vadd.f32 %v727, %v749
    %752 = vset.pattern.permute.xlu0 2
    %753 = vperm.xlu0 %752, %v628
    %v754 = vpop.permute.xlu0 %753
    %756 = vset.pattern.permute.xlu0 2
    %757 = vperm.xlu0 %756, %v654
    %v758 = vpop.permute.xlu0 %757
    %v760 = vperm.slane %v677, 2
    %v761 = vperm.slane %v700, 2
    %v762 = vadd.f32 %v754, %v760
    %v763 = vadd.f32 %v758, %v761
    %vm764 = vcmp.gt.f32.partialorder %v762, 0.0
    %vm765 = vcmp.gt.f32.partialorder %v763, 0.0
    %v766 = vmul.f32 %v762, 0.2
    %v767 = vmul.f32 %v763, 0.2
    %v768 = vsel %vm764, %v762, %v766
    %v769 = vsel %vm765, %v763, %v767
    %vm770 = vcmp.eq.s32.totalorder %v110, 3
    %vm771 = vcmp.eq.s32.totalorder %v111, 3
    %v772 = vsel %vm770, %v768, 0.0
    %v773 = vsel %vm771, %v769, 0.0
    %v774 = vadd.f32 %v750, %v772
    %v775 = vadd.f32 %v751, %v773
    %vm776 = vcmp.gt.s32.totalorder %v110, 0
    %vm777 = vcmp.gt.s32.totalorder %v111, 0
    %v778 = vsel %vm776, %v774, -1e+30
    %v779 = vsel %vm777, %v775, -1e+30
    %vm780 = vcmask 64512
    %v781 = vsel %vm780, %v778, -inf
    %782 = vmax.xlane.f32.xlu0 %v781
    %v783 = vpop.xlane.xlu0 %782
    %v784 = vsel %vm780, %v779, -inf
    %785 = vmax.xlane.f32.xlu0 %v784
    %v786 = vpop.xlane.xlu0 %785
    %v787 = vsub.f32 %v778, %v783
    %v788 = vsub.f32 %v779, %v786
    %v789 = vmul.f32 %v787, 1.442695
    %v790 = vpow.pop %v789
    %v791 = vmul.f32 %v788, 1.442695
    %v792 = vpow.pop %v791
    %v793 = vsel %vm780, %v790, 0.0
    %794 = vadd.xlane.f32.xlu0 %v793
    %v795 = vpop.xlane.xlu0 %794
    %v796 = vsel %vm780, %v792, 0.0
    %797 = vadd.xlane.f32.xlu0 %v796
    %v798 = vpop.xlane.xlu0 %797
    %v799 = vrcp.pop %v795
    %v800 = vmul.f32 %v795, %v799
    %v801 = vsub.f32 1.0, %v800
    %v802 = vmul.f32 %v799, %v801
    %v803 = vadd.f32 %v799, %v802
    %vm804 = vweird.f32 %v795
    %vm805 = vweird.f32 %v799
    %vm806 = vmor %vm804, %vm805
    %v807 = vsel %vm806, %v799, %v803
    %v808 = vand.u32 2147483647, %v795
    %vm809 = vcmp.eq.f32.partialorder %v808, 8.507059e+37
    %v810 = vand.u32 %v795, 2147483648
    %v811 = vor.u32 1.1754944e-38, %v810
    %v812 = vsel %vm809, %v811, %v807
    %v813 = vmul.f32 %v790, %v812
    %v814 = vrcp.pop %v798
    %v815 = vmul.f32 %v798, %v814
    %v816 = vsub.f32 1.0, %v815
    %v817 = vmul.f32 %v814, %v816
    %v818 = vadd.f32 %v814, %v817
    %vm819 = vweird.f32 %v798
    %vm820 = vweird.f32 %v814
    %vm821 = vmor %vm819, %vm820
    %v822 = vsel %vm821, %v814, %v818
    %v823 = vand.u32 2147483647, %v798
    %vm824 = vcmp.eq.f32.partialorder %v823, 8.507059e+37
    %v825 = vand.u32 %v798, 2147483648
    %v826 = vor.u32 1.1754944e-38, %v825
    %v827 = vsel %vm824, %v826, %v822
    %v828 = vmul.f32 %v792, %v827
    %v829 = vld [vmem:[%s503] sm:$0xff]
    %v830 = vld [vmem:[%s503 + $0x8] sm:$0xff]
    %v831 = vld [vmem:[%s503 + $0x10] sm:$0xff]
    %v832 = vld [vmem:[%s503 + $0x18] sm:$0xff]
    %833 = vmatpush.msra.mxu0 0.0
    %834 = vmatpush.msra.mxu0 0.0
    %835 = vmatpush.msra.mxu0 0.0
    %836 = vmatpush.msra.mxu0 0.0
    %837 = vmatpush.msra.mxu0 0.0
    %838 = vmatpush.msra.mxu0 0.0
    %839 = vmatpush.msra.mxu0 0.0
    %840 = vmatpush.msra.mxu0 0.0
    %841 = vmatpush.msra.mxu0 0.0
    %842 = vmatpush.msra.mxu0 0.0
    %843 = vmatpush.msra.mxu0 0.0
    %844 = vmatpush.msra.mxu0 0.0
    %845 = vmatpush.msra.mxu0 %v832
    %846 = vmatpush.msra.mxu0 %v831
    %847 = vmatpush.msra.mxu0 %v830
    %848 = vmatpush.msra.mxu0 %v829
    %849 = vmatmul.f32.gmra.mxu0 %v605
    %v850 = vpop.f32.mrf.mxu0
    %v851 = vadd.f32 0.0, %v850
    %852 = vmatmul.f32.gmra.mxu0 %v631
    %v853 = vpop.f32.mrf.mxu0
    %v854 = vadd.f32 0.0, %v853
    %855 = vdwg.mxu0
    %857 = vset.pattern.permute.xlu0 0
    %858 = vperm.xlu0 %857, %v112
    %v859 = vpop.permute.xlu0 %858
    %862 = vset.pattern.permute.xlu0 0
    %863 = vperm.xlu0 %862, %v113
    %v864 = vpop.permute.xlu0 %863
    %v866 = vmul.f32 %v851, %v859
    %v867 = vmul.f32 %v854, %v864
    %868 = vxpose.xlu0.b32.start [1/16] %v813, 128
    %869 = vxpose.xlu0.b32.cont [2/16] 0.0, 128
    %870 = vxpose.xlu0.b32.cont [3/16] 0.0, 128
    %871 = vxpose.xlu0.b32.cont [4/16] 0.0, 128
    %872 = vxpose.xlu0.b32.cont [5/16] 0.0, 128
    %873 = vxpose.xlu0.b32.cont [6/16] 0.0, 128
    %874 = vxpose.xlu0.b32.cont [7/16] 0.0, 128
    %875 = vxpose.xlu0.b32.cont [8/16] 0.0, 128
    %876 = vxpose.xlu0.b32.cont [9/16] 0.0, 128
    %877 = vxpose.xlu0.b32.cont [10/16] 0.0, 128
    %878 = vxpose.xlu0.b32.cont [11/16] 0.0, 128
    %879 = vxpose.xlu0.b32.cont [12/16] 0.0, 128
    %880 = vxpose.xlu0.b32.cont [13/16] 0.0, 128
    %881 = vxpose.xlu0.b32.cont [14/16] 0.0, 128
    %882 = vxpose.xlu0.b32.cont [15/16] 0.0, 128
    %883 = vxpose.xlu0.b32.end [16/16] 0.0, 128
    %v884 = vpop.trf.xlu0
    %v885 = vpop.trf.xlu0
    %v886 = vpop.trf.xlu0
    %v887 = vpop.trf.xlu0
    %v888 = vpop.trf.xlu0
    %v889 = vpop.trf.xlu0
    %v890 = vpop.trf.xlu0
    %v891 = vpop.trf.xlu0
    %v892 = vpop.trf.xlu0
    %v893 = vpop.trf.xlu0
    %v894 = vpop.trf.xlu0
    %v895 = vpop.trf.xlu0
    %v896 = vpop.trf.xlu0
    %v897 = vpop.trf.xlu0
    %v898 = vpop.trf.xlu0
    %v899 = vpop.trf.xlu0
    %v901 = vsel %vm780, %v884, 0
    %903 = vmatpush.msra.mxu0 0.0
    %904 = vmatpush.msra.mxu0 0.0
    %905 = vmatpush.msra.mxu0 0.0
    %906 = vmatpush.msra.mxu0 0.0
    %907 = vmatpush.msra.mxu0 0.0
    %908 = vmatpush.msra.mxu0 0.0
    %909 = vmatpush.msra.mxu0 0.0
    %910 = vmatpush.msra.mxu0 0.0
    %911 = vmatpush.msra.mxu0 0.0
    %912 = vmatpush.msra.mxu0 0.0
    %913 = vmatpush.msra.mxu0 0.0
    %914 = vmatpush.msra.mxu0 0.0
    %915 = vmatpush.msra.mxu0 0.0
    %916 = vmatpush.msra.mxu0 0.0
    %917 = vmatpush.msra.mxu0 0.0
    %918 = vmatpush.msra.mxu0 %v866
    %919 = vmatmul.f32.gmra.mxu0 %v901
    %v920 = vpop.f32.mrf.mxu0
    %v921 = vadd.f32 0.0, %v920
    %922 = vdwg.mxu0
    %923 = vxpose.xlu0.b32.start [1/16] %v828, 128
    %924 = vxpose.xlu0.b32.cont [2/16] 0.0, 128
    %925 = vxpose.xlu0.b32.cont [3/16] 0.0, 128
    %926 = vxpose.xlu0.b32.cont [4/16] 0.0, 128
    %927 = vxpose.xlu0.b32.cont [5/16] 0.0, 128
    %928 = vxpose.xlu0.b32.cont [6/16] 0.0, 128
    %929 = vxpose.xlu0.b32.cont [7/16] 0.0, 128
    %930 = vxpose.xlu0.b32.cont [8/16] 0.0, 128
    %931 = vxpose.xlu0.b32.cont [9/16] 0.0, 128
    %932 = vxpose.xlu0.b32.cont [10/16] 0.0, 128
    %933 = vxpose.xlu0.b32.cont [11/16] 0.0, 128
    %934 = vxpose.xlu0.b32.cont [12/16] 0.0, 128
    %935 = vxpose.xlu0.b32.cont [13/16] 0.0, 128
    %936 = vxpose.xlu0.b32.cont [14/16] 0.0, 128
    %937 = vxpose.xlu0.b32.cont [15/16] 0.0, 128
    %938 = vxpose.xlu0.b32.end [16/16] 0.0, 128
    %v939 = vpop.trf.xlu0
    %v940 = vpop.trf.xlu0
    %v941 = vpop.trf.xlu0
    %v942 = vpop.trf.xlu0
    %v943 = vpop.trf.xlu0
    %v944 = vpop.trf.xlu0
    %v945 = vpop.trf.xlu0
    %v946 = vpop.trf.xlu0
    %v947 = vpop.trf.xlu0
    %v948 = vpop.trf.xlu0
    %v949 = vpop.trf.xlu0
    %v950 = vpop.trf.xlu0
    %v951 = vpop.trf.xlu0
    %v952 = vpop.trf.xlu0
    %v953 = vpop.trf.xlu0
    %v954 = vpop.trf.xlu0
    %v956 = vsel %vm780, %v939, 0
    %958 = vmatpush.msra.mxu0 0.0
    %959 = vmatpush.msra.mxu0 0.0
    %960 = vmatpush.msra.mxu0 0.0
    %961 = vmatpush.msra.mxu0 0.0
    %962 = vmatpush.msra.mxu0 0.0
    %963 = vmatpush.msra.mxu0 0.0
    %964 = vmatpush.msra.mxu0 0.0
    %965 = vmatpush.msra.mxu0 0.0
    %966 = vmatpush.msra.mxu0 0.0
    %967 = vmatpush.msra.mxu0 0.0
    %968 = vmatpush.msra.mxu0 0.0
    %969 = vmatpush.msra.mxu0 0.0
    %970 = vmatpush.msra.mxu0 0.0
    %971 = vmatpush.msra.mxu0 0.0
    %972 = vmatpush.msra.mxu0 0.0
    %973 = vmatpush.msra.mxu0 %v867
    %974 = vmatmul.f32.gmra.mxu0 %v956
    %v975 = vpop.f32.mrf.mxu0
    %v976 = vadd.f32 0.0, %v975
    %977 = vdwg.mxu0
    %978 = vst.msk [vmem:[#allocation11] sm:$0xff] %vm130, %v921
    %979 = vst.msk [vmem:[#allocation11 + $0x8] sm:$0xff] %vm130, %v976
    // Predicated region
    $region54: #{tpu_custom_call.1} parent=1 // pred_check
      _
    $region55: #{tpu_custom_call.1} parent=1 // pred_check_branch
      %981 = sbr.rel (0) target = $region57
    $region56: #{tpu_custom_call.1} parent=1 // pred_region
      %983 = vsyncadd [#allocation4], 0
      %s984 = sshll.u32 [#allocation11], 4
      %s985 = int_to_ptr.vmem [resolvable:$true] %s984
      %s986 = sshll.u32 %s8, 4
      %s987 = int_to_ptr.hbm [resolvable:$true] %s986
      %992 = dma.vmem_to_hbm [thread:$0]  %s985, 256, %s987, [#allocation4], 128, 128, 8
    $region57: #{tpu_custom_call.1} parent=1 // pred_fallthru
      _
    // Predicated region
    $region58: #{tpu_custom_call.1} parent=1 // pred_check
      _
    $region59: #{tpu_custom_call.1} parent=1 // pred_check_branch
      %994 = sbr.rel (0) target = $region61
    $region60: #{tpu_custom_call.1} parent=1 // pred_region
      %996 = dma.done [#allocation4], 256
    $region61: #{tpu_custom_call.1} parent=1 // pred_fallthru
      _
    %997 = vsyncpa [#allocation3], 1
    %998 = vsyncpa [#allocation6], 1
    %999 = vsyncpa [#allocation9], 1
    %1000 = vsyncpa [#allocation4], 1

</llo_original>
